<compile_context>
chip_gen: v5e
topology: v5e:2x2
jax: 0.10.0
libtpu: 0.0.40
codegen_flags: <defaults>
</compile_context>

<pallas_src>
import functools

import jax
import jax.numpy as jnp
import numpy as np
from jax.experimental import pallas as pl
from jax.experimental.pallas import tpu as pltpu

LANE = 128
TILE_R_MAX = 1024                       # 1024*128*4B = 512 KiB per f32 buffer
EPS = float(np.finfo(float).eps)        # same constant the torch path uses


def _round_up(v, m):
    return ((v + m - 1) // m) * m


def _sublane(dtype):
    return {4: 8, 2: 16, 1: 32}.get(jnp.dtype(dtype).itemsize, 8)


def _pow(u, gamma):
    """u**gamma, specialized to VPU multiplies for small integer gamma."""
    g = float(gamma)
    if g == int(g) and 0 <= int(g) <= 8:
        gi = int(g)
        if gi == 0:
            return jnp.ones_like(u)
        r = u
        for _ in range(gi - 1):
            r = r * u
        return r
    return u ** g


def _focal_elementwise(x, t, alpha, gamma):
    pos = t == 1
    x = x.astype(jnp.float32)           # native-dtype load; f32 compute on VPU
    p_t = jnp.where(pos, x, 1.0 - x)
    fl = -_pow(1.0 - p_t, gamma) * jnp.log(p_t + EPS)
    return jnp.where(pos, fl * alpha, fl * (1.0 - alpha))


def _focal_map_kernel(x_ref, t_ref, fl_ref, *, alpha, gamma):
    fl_ref[...] = _focal_elementwise(
        x_ref[...], t_ref[...], alpha, gamma).astype(fl_ref.dtype)


def _focal_sum_kernel(x_ref, t_ref, part_ref, acc_ref, *, alpha, gamma,
                      n_valid, tile_elems, blocks_per_split, needs_mask):
    ci = pl.program_id(0)               # split index (one per TC on v7x)
    j = pl.program_id(1)

    @pl.when(j == 0)
    def _init():
        acc_ref[...] = jnp.zeros_like(acc_ref)

    fl = _focal_elementwise(x_ref[...], t_ref[...], alpha, gamma)

    if needs_mask:
        blk = ci * blocks_per_split + j

        def _acc_plain():
            acc_ref[...] += fl          # interior tiles: pure VPU adds

        def _acc_masked():
            # Only boundary (or duplicated, index-clamped) blocks pay for the
            # iota/compare/select; garbage / padded / duplicated elements have
            # global flat index >= n_valid and are discarded by the select.
            rid = jax.lax.broadcasted_iota(jnp.int32, fl.shape, 0)
            cid = jax.lax.broadcasted_iota(jnp.int32, fl.shape, 1)
            flat = blk * tile_elems + rid * LANE + cid
            acc_ref[...] += jnp.where(flat < n_valid, fl, 0.0)

        boundary = (blk + 1) * tile_elems > n_valid
        pl.when(boundary)(_acc_masked)
        pl.when(jnp.logical_not(boundary))(_acc_plain)
    else:
        acc_ref[...] += fl

    @pl.when(j == pl.num_programs(1) - 1)
    def _finalize():
        part_ref[0, 0] = jnp.sum(acc_ref[...])


def focal_loss(x, target, alpha=1.0, gamma=2.0, reduction="mean",
               _tile_r_max=TILE_R_MAX):
    if reduction not in ("mean", "none", "sum"):
        raise NotImplementedError(f"Reduction {reduction} not implemented.")

    x = jnp.asarray(x)
    if not jnp.issubdtype(x.dtype, jnp.floating):
        x = x.astype(jnp.float32)
    orig_shape = x.shape
    n = int(np.prod(orig_shape)) if len(orig_shape) else 1

    if n == 0:                          # matches torch: mean of empty = NaN
        if reduction == "none":
            return jnp.zeros(orig_shape, x.dtype)
        return jnp.float32(0.0) if reduction == "sum" else jnp.float32(np.nan)

    t = jnp.asarray(target)
    if t.dtype == jnp.bool_:
        t = t.astype(jnp.int8)          # keep targets narrow: 1 B/elem HBM read

    xf = x.reshape(-1)                  # reshape only -- no dtype cast, no copy
    tf = t.reshape(-1)

    # Pad only when the flattened length is not lane-aligned (<= 127 elems);
    # padded entries are masked out in-kernel (sum/mean) or sliced off (none).
    pad = (-n) % LANE
    if pad:
        xf = jnp.concatenate([xf, jnp.ones((pad,), xf.dtype)])
        tf = jnp.concatenate([tf, jnp.ones((pad,), tf.dtype)])
    rows = (n + pad) // LANE
    x2 = xf.reshape(rows, LANE)
    t2 = tf.reshape(rows, LANE)

    sublane = max(_sublane(x2.dtype), _sublane(t2.dtype))
    tile_r = min(_tile_r_max, _round_up(rows, sublane))   # multiple of 8
    grid_steps = (rows + tile_r - 1) // tile_r

    if reduction == "none":
        kernel = functools.partial(_focal_map_kernel,
                                   alpha=float(alpha), gamma=float(gamma))
        fl2 = pl.pallas_call(
            kernel,
            # Output in the input dtype (bf16 in -> bf16 out) to cut writeback.
            out_shape=jax.ShapeDtypeStruct((rows, LANE), x2.dtype),
            grid_spec=pltpu.PrefetchScalarGridSpec(
                num_scalar_prefetch=0,
                grid=(grid_steps,),
                in_specs=[pl.BlockSpec((tile_r, LANE), lambda i: (i, 0)),
                          pl.BlockSpec((tile_r, LANE), lambda i: (i, 0))],
                out_specs=pl.BlockSpec((tile_r, LANE), lambda i: (i, 0)),
            ),
            compiler_params=pltpu.CompilerParams(
                dimension_semantics=("parallel",)),
        )(x2, t2)
        out = fl2.reshape(-1)
        if pad:
            out = out[:n]
        return out.reshape(orig_shape)

    # 'sum' / 'mean': scalar-only outputs -- fl is never written back to HBM.
    # Two-way split of the streaming reduction for the v7x megacore; the
    # duplicated trailing block (odd grid_steps) is index-clamped and masked.
    num_splits = 2 if grid_steps >= 2 else 1
    bpc = (grid_steps + num_splits - 1) // num_splits
    tile_elems = tile_r * LANE
    needs_mask = (num_splits * bpc * tile_elems) != n
    last_block = grid_steps - 1

    def in_map(ci, j):
        return (jnp.minimum(ci * bpc + j, last_block), 0)

    kernel = functools.partial(
        _focal_sum_kernel, alpha=float(alpha), gamma=float(gamma),
        n_valid=n, tile_elems=tile_elems, blocks_per_split=bpc,
        needs_mask=needs_mask)
    partials = pl.pallas_call(
        kernel,
        out_shape=jax.ShapeDtypeStruct((num_splits, 1), jnp.float32),
        grid_spec=pltpu.PrefetchScalarGridSpec(
            num_scalar_prefetch=0,
            grid=(num_splits, bpc),
            in_specs=[pl.BlockSpec((tile_r, LANE), in_map),
                      pl.BlockSpec((tile_r, LANE), in_map)],
            out_specs=pl.BlockSpec((1, 1), lambda ci, j: (ci, 0),
                                   memory_space=pltpu.SMEM),
            scratch_shapes=[pltpu.VMEM((tile_r, LANE), jnp.float32)],
        ),
        compiler_params=pltpu.CompilerParams(
            dimension_semantics=("parallel", "arbitrary")),
    )(x2, t2)

    total = jnp.sum(partials)
    if reduction == "sum":
        return total
    return total / jnp.float32(n)


if __name__ == "__main__":
    key = jax.random.PRNGKey(0)
    kx, kt, kx2, kt2, kx3, kt3 = jax.random.split(key, 6)

    def ref_focal(x, target, alpha, gamma, reduction):
        x = jnp.asarray(x).astype(jnp.float32)
        target = jnp.asarray(target)
        p_t = jnp.where(target == 1, x, 1 - x)
        fl = -1 * (1 - p_t) ** gamma * jnp.log(p_t + EPS)
        fl = jnp.where(target == 1, fl * alpha, fl * (1 - alpha))
        if reduction == "mean":
            return fl.mean()
        if reduction == "sum":
            return fl.sum()
        return fl

    def close(a, b, rtol=1e-4, atol=1e-4):
        return bool(jnp.allclose(jnp.asarray(a, jnp.float32),
                                 jnp.asarray(b, jnp.float32),
                                 rtol=rtol, atol=atol))

    ok = True

    # Small NCHW probabilities + binary targets (batch=2, channels=4, 16x16).
    B, C, H, W = 2, 4, 16, 16
    x = jax.random.uniform(kx, (B, C, H, W), jnp.float32, minval=0.01, maxval=0.99)
    t_f32 = jax.random.bernoulli(kt, 0.5, (B, C, H, W)).astype(jnp.float32)
    t_bool = t_f32 > 0.5

    for reduction in ("mean", "sum", "none"):
        out = jax.block_until_ready(
            focal_loss(x, t_f32, alpha=0.25, gamma=2.0, reduction=reduction))
        ok &= close(out, ref_focal(x, t_f32, 0.25, 2.0, reduction))

    out = jax.block_until_ready(
        focal_loss(x, t_f32, alpha=0.5, gamma=1.5, reduction="mean"))
    ok &= close(out, ref_focal(x, t_f32, 0.5, 1.5, "mean"))

    # bool targets stay narrow (int8) on the kernel side; exercises the mask.
    out = jax.block_until_ready(
        focal_loss(x, t_bool, alpha=0.25, gamma=2.0, reduction="mean"))
    ok &= close(out, ref_focal(x, t_f32, 0.25, 2.0, "mean"))

    # bf16 activations: kernel reads bf16 and upcasts on the VPU.
    x_bf16 = x.astype(jnp.bfloat16)
    out = jax.block_until_ready(
        focal_loss(x_bf16, t_f32, alpha=0.25, gamma=2.0, reduction="mean"))
    ok &= close(out, ref_focal(x_bf16.astype(jnp.float32), t_f32, 0.25, 2.0, "mean"))

    # Non-lane-aligned shape (padded fallback + gated in-kernel mask).
    xr = jax.random.uniform(kx2, (3, 5, 7), jnp.float32, minval=0.01, maxval=0.99)
    tr = jax.random.bernoulli(kt2, 0.5, (3, 5, 7)).astype(jnp.float32)
    for reduction in ("mean", "none"):
        out = jax.block_until_ready(focal_loss(xr, tr, 0.25, 2.0, reduction))
        ok &= close(out, ref_focal(xr, tr, 0.25, 2.0, reduction))

    # Multi-block grid + two-way core split (odd block count -> clamped dup).
    xb = jax.random.uniform(kx3, (40, 128), jnp.float32, minval=0.01, maxval=0.99)
    tb = jax.random.bernoulli(kt3, 0.5, (40, 128)).astype(jnp.float32)
    for reduction in ("sum", "none"):
        out = jax.block_until_ready(
            focal_loss(xb, tb, 0.5, 2.0, reduction, _tile_r_max=8))
        ok &= close(out, ref_focal(xb, tb, 0.5, 2.0, reduction))

    print("KERNEL_OK" if ok else "MISMATCH")
</pallas_src>

<mosaic_0001>
module attributes {stable_mosaic.version = 11 : i64} {
  func.func @_focal_sum_kernel(%arg0: i32, %arg1: i32, %arg2: memref<16x128xf32, #tpu.memory_space<vmem>>, %arg3: memref<16x128xf32, #tpu.memory_space<vmem>>, %arg4: memref<1x1xf32, #tpu.memory_space<smem>>, %arg5: memref<16x128xf32, #tpu.memory_space<vmem>>) attributes {dimension_semantics = [#tpu.dimension_semantics<parallel>, #tpu.dimension_semantics<arbitrary>], iteration_bounds = array<i64: 1, 1>, scalar_prefetch = 0 : i64, scratch_operands = 1 : i64, tpu.core_type = #tpu.core_type<tc>, window_params = [{transform_indices = @transform_0, window_bounds = array<i64: 16, 128>}, {transform_indices = @transform_1, window_bounds = array<i64: 16, 128>}, {transform_indices = @transform_2, window_bounds = array<i64: 1, 1>}]} {
    %c0_i32 = arith.constant 0 : i32
    %0 = arith.cmpi eq, %arg1, %c0_i32 : i32
    %1 = arith.extui %0 : i1 to i32
    %c0_i32_0 = arith.constant 0 : i32
    %2 = arith.cmpi ne, %1, %c0_i32_0 : i32
    scf.if %2 {
      %cst_16 = arith.constant 0.000000e+00 : f32
      %30 = vector.broadcast %cst_16 : f32 to vector<16x128xf32>
      %c0_17 = arith.constant 0 : index
      %c0_18 = arith.constant 0 : index
      %31 = vector.load %arg5[%c0_17, %c0_18] : memref<16x128xf32, #tpu.memory_space<vmem>>, vector<16x128xf32>
      tpu.vector_store %arg5[%c0_17, %c0_18], %30 {strides = array<i32>} : memref<16x128xf32, #tpu.memory_space<vmem>>, vector<16x128xf32>,
    } else {
    }
    %c0 = arith.constant 0 : index
    %c0_1 = arith.constant 0 : index
    %3 = vector.load %arg2[%c0, %c0_1] : memref<16x128xf32, #tpu.memory_space<vmem>>, vector<16x128xf32>
    %c0_2 = arith.constant 0 : index
    %c0_3 = arith.constant 0 : index
    %4 = vector.load %arg3[%c0_2, %c0_3] : memref<16x128xf32, #tpu.memory_space<vmem>>, vector<16x128xf32>
    %cst = arith.constant 1.000000e+00 : f32
    %5 = vector.broadcast %cst : f32 to vector<16x128xf32>
    %6 = arith.cmpf oeq, %4, %5 : vector<16x128xf32>
    %cst_4 = arith.constant 1.000000e+00 : f32
    %7 = vector.broadcast %cst_4 : f32 to vector<16x128xf32>
    %8 = arith.subf %7, %3 : vector<16x128xf32>
    %9 = arith.select %6, %3, %8 : vector<16x128xi1>, vector<16x128xf32>
    %cst_5 = arith.constant 1.000000e+00 : f32
    %10 = vector.broadcast %cst_5 : f32 to vector<16x128xf32>
    %11 = arith.subf %10, %9 : vector<16x128xf32>
    %12 = arith.mulf %11, %11 : vector<16x128xf32>
    %cst_6 = arith.constant 0.000000e+00 : f32
    %13 = vector.broadcast %cst_6 : f32 to vector<16x128xf32>
    %14 = arith.subf %13, %12 : vector<16x128xf32>
    %cst_7 = arith.constant 2.22044605E-16 : f32
    %15 = vector.broadcast %cst_7 : f32 to vector<16x128xf32>
    %16 = arith.addf %9, %15 : vector<16x128xf32>
    %17 = math.log %16 : vector<16x128xf32>
    %18 = arith.mulf %14, %17 : vector<16x128xf32>
    %cst_8 = arith.constant 2.500000e-01 : f32
    %19 = vector.broadcast %cst_8 : f32 to vector<16x128xf32>
    %20 = arith.mulf %18, %19 : vector<16x128xf32>
    %cst_9 = arith.constant 7.500000e-01 : f32
    %21 = vector.broadcast %cst_9 : f32 to vector<16x128xf32>
    %22 = arith.mulf %18, %21 : vector<16x128xf32>
    %23 = arith.select %6, %20, %22 : vector<16x128xi1>, vector<16x128xf32>
    %c0_10 = arith.constant 0 : index
    %c0_11 = arith.constant 0 : index
    %24 = vector.load %arg5[%c0_10, %c0_11] : memref<16x128xf32, #tpu.memory_space<vmem>>, vector<16x128xf32>
    %25 = arith.addf %24, %23 : vector<16x128xf32>
    %c0_12 = arith.constant 0 : index
    %c0_13 = arith.constant 0 : index
    %26 = vector.load %arg5[%c0_12, %c0_13] : memref<16x128xf32, #tpu.memory_space<vmem>>, vector<16x128xf32>
    tpu.vector_store %arg5[%c0_12, %c0_13], %25 {strides = array<i32>} : memref<16x128xf32, #tpu.memory_space<vmem>>, vector<16x128xf32>,
    %c0_i32_14 = arith.constant 0 : i32
    %27 = arith.cmpi eq, %arg1, %c0_i32_14 : i32
    %28 = arith.extui %27 : i1 to i32
    %c0_i32_15 = arith.constant 0 : i32
    %29 = arith.cmpi ne, %28, %c0_i32_15 : i32
    scf.if %29 {
      %c0_16 = arith.constant 0 : index
      %c0_17 = arith.constant 0 : index
      %30 = vector.load %arg5[%c0_16, %c0_17] : memref<16x128xf32, #tpu.memory_space<vmem>>, vector<16x128xf32>
      %31 = vector.shape_cast %30 : vector<16x128xf32> to vector<1x16x128xf32>
      %cst_18 = arith.constant dense<0.000000e+00> : vector<1xf32>
      %32 = vector.multi_reduction <add>, %31, %cst_18 [1, 2] : vector<1x16x128xf32> to vector<1xf32>
      %33 = vector.shape_cast %32 : vector<1xf32> to vector<1x1x1xf32>
      %34 = vector.extract %33[0, 0, 0] : f32 from vector<1x1x1xf32>
      %c0_19 = arith.constant 0 : index
      %c0_20 = arith.constant 0 : index
      %35 = memref.load %arg4[%c0_19, %c0_20] : memref<1x1xf32, #tpu.memory_space<smem>>
      memref.store %34, %arg4[%c0_19, %c0_20] : memref<1x1xf32, #tpu.memory_space<smem>>
    } else {
    }
    return
  }
  func.func @transform_0(%arg0: i32, %arg1: i32) -> (i32, i32) {
    %c1_i32 = arith.constant 1 : i32
    %0 = arith.muli %arg0, %c1_i32 : i32
    %1 = arith.addi %0, %arg1 : i32
    %c0_i32 = arith.constant 0 : i32
    %2 = arith.minsi %1, %c0_i32 : i32
    %c0_i32_0 = arith.constant 0 : i32
    %c0_i32_1 = arith.constant 0 : i32
    return %2, %c0_i32_0 : i32, i32
  }
  func.func @transform_1(%arg0: i32, %arg1: i32) -> (i32, i32) {
    %c1_i32 = arith.constant 1 : i32
    %0 = arith.muli %arg0, %c1_i32 : i32
    %1 = arith.addi %0, %arg1 : i32
    %c0_i32 = arith.constant 0 : i32
    %2 = arith.minsi %1, %c0_i32 : i32
    %c0_i32_0 = arith.constant 0 : i32
    %c0_i32_1 = arith.constant 0 : i32
    return %2, %c0_i32_0 : i32, i32
  }
  func.func @transform_2(%arg0: i32, %arg1: i32) -> (i32, i32) {
    %c0_i32 = arith.constant 0 : i32
    %c0_i32_0 = arith.constant 0 : i32
    return %arg0, %c0_i32 : i32, i32
  }
}

</mosaic_0001>

<llo_original>
// kernel: tpu_custom_call.1
$region0: #{tpu_custom_call.1}
  #allocation0 [shape = 'u32[]', space=smem, size = 0x4, offset = 0x4, fixed_abs, tag = 'smem constant byte address 0x4 - core index']
  #allocation1 [shape = 'u32[72,128]{1,0:T(1,128)}', space=vmem, size = 0x9000, scoped, tag = 'internal scratch']
  #allocation2 [shape = 'f32[16,128]{1,0:T(8,128)}', space=vmem, size = 0x2000, scoped, tag = 'scratch operand']
  %s0 = inlined_call_operand.hbm [shape: f32[16,128], index: 0, kind: input, shape index: {}]
  %s1 = inlined_call_operand.hbm [shape: f32[16,128], index: 1, kind: input, shape index: {}]
  %s2 = inlined_call_operand.hbm [shape: f32[1,1], index: 2, kind: output, shape index: {}]
  %s3 = sld [smem:[#allocation0]]
  $region34: #{tpu_custom_call.1} parent=0
    _
  %s5 = ssub.s32 1, %s3
  %s6 = scalar_select 0, %s5, %s3
  $region1: #{tpu_custom_call.1} parent=0
    #allocation3 [shape = 'u8[8192]{0}', space=vmem, size = 0x2000, scoped, tag = 'input window, operand 0, single buffered']
    #allocation4 [shape = 's32[1]{0}', space=sflag, size = 0x4, scoped, tag = 'scoped memory for tpu_custom_call.1']
    #allocation5 [shape = 's32[1]{0}', space=sflag, size = 0x4, scoped, tag = 'scoped memory for tpu_custom_call.1']
    #allocation6 [shape = 'u8[8192]{0}', space=vmem, size = 0x2000, scoped, tag = 'input window, operand 1, single buffered']
    #allocation7 [shape = 's32[1]{0}', space=sflag, size = 0x4, scoped, tag = 'scoped memory for tpu_custom_call.1']
    #allocation8 [shape = 'u8[512]{0}', space=smem, size = 0x200, scoped, tag = 'output window, operand 0, single buffered']
    %7 = vsyncpa [#allocation4], 0
    %8 = vsyncpa [#allocation7], 0
    %9 = vsyncpa [#allocation5], 0
    // Predicated region
    $region2: #{tpu_custom_call.1} parent=1 // pred_check
      _
    $region3: #{tpu_custom_call.1} parent=1 // pred_check_branch
      %11 = sbr.rel (0) target = $region5
    $region4: #{tpu_custom_call.1} parent=1 // pred_region
      %s12 = sadd.s32 0, 0
      %p13 = scmp.lt.s32.totalorder %s12, 0
      %s14 = scalar_select %p13, %s12, 0
      %s15 = smul.u32 2, %s14
      %17 = vsyncadd [#allocation4], 0
      %s18 = smul.addr %s15, 8
      %s19 = scalar_lea.hbm %s0, %s18
      %s20 = sshll.u32 %s19, 4
      %s21 = int_to_ptr.hbm [resolvable:$true] %s20
      %s22 = sshll.u32 [#allocation3], 4
      %s23 = int_to_ptr.vmem [resolvable:$true] %s22
      %28 = dma.hbm_to_vmem [thread:$0]  %s21, 256, %s23, [#allocation4], 128, 128, 8
    $region5: #{tpu_custom_call.1} parent=1 // pred_fallthru
      _
    // Predicated region
    $region6: #{tpu_custom_call.1} parent=1 // pred_check
      _
    $region7: #{tpu_custom_call.1} parent=1 // pred_check_branch
      %30 = sbr.rel (0) target = $region9
    $region8: #{tpu_custom_call.1} parent=1 // pred_region
      %s31 = sadd.s32 0, 0
      %p32 = scmp.lt.s32.totalorder %s31, 0
      %s33 = scalar_select %p32, %s31, 0
      %s34 = smul.u32 2, %s33
      %36 = vsyncadd [#allocation7], 0
      %s37 = smul.addr %s34, 8
      %s38 = scalar_lea.hbm %s1, %s37
      %s39 = sshll.u32 %s38, 4
      %s40 = int_to_ptr.hbm [resolvable:$true] %s39
      %s41 = sshll.u32 [#allocation6], 4
      %s42 = int_to_ptr.vmem [resolvable:$true] %s41
      %47 = dma.hbm_to_vmem [thread:$0]  %s40, 256, %s42, [#allocation7], 128, 128, 8
    $region9: #{tpu_custom_call.1} parent=1 // pred_fallthru
      _
    // Predicated region
    $region10: #{tpu_custom_call.1} parent=1 // pred_check
      _
    $region11: #{tpu_custom_call.1} parent=1 // pred_check_branch
      %49 = sbr.rel (0) target = $region13
    $region12: #{tpu_custom_call.1} parent=1 // pred_region
      %51 = dma.done [#allocation4], 256
    $region13: #{tpu_custom_call.1} parent=1 // pred_fallthru
      _
    // Predicated region
    $region14: #{tpu_custom_call.1} parent=1 // pred_check
      _
    $region15: #{tpu_custom_call.1} parent=1 // pred_check_branch
      %53 = sbr.rel (0) target = $region17
    $region16: #{tpu_custom_call.1} parent=1 // pred_region
      %55 = dma.done [#allocation7], 256
    $region17: #{tpu_custom_call.1} parent=1 // pred_fallthru
      _
    %s56 = sadd.s32 0, 0
    %p57 = scmp.lt.s32.totalorder %s56, 0
    %s58 = scalar_select %p57, %s56, 0
    %s59 = smul.u32 2, %s58
    %s60 = sadd.s32 0, 0
    %p61 = scmp.lt.s32.totalorder %s60, 0
    %s62 = scalar_select %p61, %s60, 0
    %s63 = smul.u32 2, %s62
    %p64 = scmp.eq.s32.totalorder 0, 0
    // Predicated region
    $region18: #{tpu_custom_call.1} parent=1 // pred_check
      %p65 = pneg %p64
    $region19: #{tpu_custom_call.1} parent=1 // pred_check_branch
      %67 = sbr.rel (%p65) target = $region21
    $region20: #{tpu_custom_call.1} parent=1 // pred_region
      %68 = vst [vmem:[#allocation2] sm:$0xff] 0.0
      %69 = vst [vmem:[#allocation2 + $0x8] sm:$0xff] 0.0
    $region21: #{tpu_custom_call.1} parent=1 // pred_fallthru
      _
    %v70 = vld [vmem:[#allocation3] sm:$0xff]
    %v71 = vld [vmem:[#allocation3 + $0x8] sm:$0xff]
    %v72 = vld [vmem:[#allocation6] sm:$0xff]
    %v73 = vld [vmem:[#allocation6 + $0x8] sm:$0xff]
    %vm74 = vcmp.eq.f32.partialorder %v72, 1.0
    %vm75 = vcmp.eq.f32.partialorder %v73, 1.0
    %v76 = vsub.f32 1.0, %v70
    %v77 = vsub.f32 1.0, %v71
    %v78 = vsel %vm74, %v70, %v76
    %v79 = vsel %vm75, %v71, %v77
    %v80 = vsub.f32 1.0, %v78
    %v81 = vsub.f32 1.0, %v79
    %v82 = vmul.f32 %v80, %v80
    %v83 = vmul.f32 %v81, %v81
    %v84 = vsub.f32 0.0, %v82
    %v85 = vsub.f32 0.0, %v83
    %v86 = vadd.f32 %v78, 2.220446e-16
    %v87 = vadd.f32 %v79, 2.220446e-16
    %v88 = vlog2.pop %v86
    %v89 = vmul.f32 %v88, 0.6931472
    %v90 = vlog2.pop %v87
    %v91 = vmul.f32 %v90, 0.6931472
    %v92 = vmul.f32 %v84, %v89
    %v93 = vmul.f32 %v85, %v91
    %v94 = vmul.f32 %v92, 0.25
    %v95 = vmul.f32 %v93, 0.25
    %v96 = vmul.f32 %v92, 0.75
    %v97 = vmul.f32 %v93, 0.75
    %v98 = vsel %vm74, %v94, %v96
    %v99 = vsel %vm75, %v95, %v97
    %v100 = vld [vmem:[#allocation2] sm:$0xff]
    %v101 = vld [vmem:[#allocation2 + $0x8] sm:$0xff]
    %v102 = vadd.f32 %v100, %v98
    %v103 = vadd.f32 %v101, %v99
    %104 = vst [vmem:[#allocation2] sm:$0xff] %v102
    %105 = vst [vmem:[#allocation2 + $0x8] sm:$0xff] %v103
    // Predicated region
    $region22: #{tpu_custom_call.1} parent=1 // pred_check
      %p106 = pneg %p64
    $region23: #{tpu_custom_call.1} parent=1 // pred_check_branch
      %108 = sbr.rel (%p106) target = $region25
    $region24: #{tpu_custom_call.1} parent=1 // pred_region
      %v109 = vld [vmem:[#allocation2] sm:$0xff]
      %v110 = vld [vmem:[#allocation2 + $0x8] sm:$0xff]
      %v111 = vadd.f32 %v109, %v110
      %112 = vadd.xlane.f32.xlu0 %v111
      %v113 = vpop.xlane.xlu0 %112
      %v114 = vrot.slane %v113, 4
      %v115 = vadd.f32 %v113, %v114
      %v116 = vrot.slane %v115, 2
      %v117 = vadd.f32 %v115, %v116
      %v118 = vrot.slane %v117, 1
      %v119 = vadd.f32 %v117, %v118
      %s120 = vtos %v119
      %s121 = scalar_lea.smem [#allocation8], 0
      %122 = sst [smem:[%s121]] %s120
    $region25: #{tpu_custom_call.1} parent=1 // pred_fallthru
      _
    // Predicated region
    $region26: #{tpu_custom_call.1} parent=1 // pred_check
      _
    $region27: #{tpu_custom_call.1} parent=1 // pred_check_branch
      %124 = sbr.rel (0) target = $region29
    $region28: #{tpu_custom_call.1} parent=1 // pred_region
      %126 = vsyncadd [#allocation5], 0
      %s128 = sshll.u32 %s2, 4
      %s129 = int_to_ptr.hbm [resolvable:$true] %s128
      %131 = dma.smem_to_hbm [#allocation8], 16, %s129, [#allocation5]
    $region29: #{tpu_custom_call.1} parent=1 // pred_fallthru
      _
    // Predicated region
    $region30: #{tpu_custom_call.1} parent=1 // pred_check
      _
    $region31: #{tpu_custom_call.1} parent=1 // pred_check_branch
      %133 = sbr.rel (0) target = $region33
    $region32: #{tpu_custom_call.1} parent=1 // pred_region
      %135 = dma.done [#allocation5], 16
    $region33: #{tpu_custom_call.1} parent=1 // pred_fallthru
      _
    %136 = sfence
    %137 = vsyncpa [#allocation4], 1
    %138 = vsyncpa [#allocation7], 1
    %139 = vsyncpa [#allocation5], 1

</llo_original>
